<compile_context>
chip_gen: v5e
topology: v5e:2x2
jax: 0.10.0
libtpu: 0.0.40
codegen_flags: <defaults>
</compile_context>

<pallas_src>
import functools
import math

import jax
import jax.numpy as jnp
from jax import lax
from jax.experimental import pallas as pl
from jax.experimental.pallas import tpu as pltpu


_NEG_INF = float(-1e30)  # large-negative mask value (avoids -inf-(-inf) NaNs)


def _round_up(x, m):
    return ((x + m - 1) // m) * m


def _choose_seq_tile(s):
    # 256-wide tiles fill the v6e/v7x 256x256 MXU; fall back for short sequences.
    if s >= 256:
        return 256
    if s >= 128:
        return 128
    return _round_up(s, 8)


def _choose_red_tile(dm_pad):
    # Largest 128-multiple tile (<=512) that divides the padded d_model.
    for t in (512, 256, 128):
        if dm_pad >= t and dm_pad % t == 0:
            return t
    return dm_pad


def _qkv_proj_kernel(x_ref, w_ref, q_ref, k_ref, v_ref, acc_ref, *, dk_pad):
    """Fused Q/K/V projection: acc += x_tile @ [wq*scale | wk | wv] over dm tiles."""
    di = pl.program_id(2)

    @pl.when(di == 0)
    def _init():
        acc_ref[...] = jnp.zeros_like(acc_ref)

    acc_ref[...] += jnp.dot(x_ref[0], w_ref[...],
                            preferred_element_type=jnp.float32)

    @pl.when(di == pl.num_programs(2) - 1)
    def _finalize():
        acc = acc_ref[...]
        # Lane-aligned (multiple-of-128) column slices -> no relayout copies.
        q_ref[0] = acc[:, :dk_pad].astype(q_ref.dtype)
        k_ref[0] = acc[:, dk_pad:2 * dk_pad].astype(k_ref.dtype)
        v_ref[0] = acc[:, 2 * dk_pad:].astype(v_ref.dtype)


def _flash_attn_kernel(q_ref, k_ref, v_ref, *rest, masked):
    """Flash attention over pre-projected Q/K/V tiles (online softmax)."""
    if masked:
        kbias_ref, o_ref, m_sc, l_sc, acc_sc = rest
    else:
        o_ref, m_sc, l_sc, acc_sc = rest

    ki = pl.program_id(2)

    @pl.when(ki == 0)
    def _init():
        m_sc[...] = jnp.full_like(m_sc, _NEG_INF)
        l_sc[...] = jnp.zeros_like(l_sc)
        acc_sc[...] = jnp.zeros_like(acc_sc)

    # scores = (q / sqrt(d_k)) @ k.T ; the scale was folded into wq in pass 1.
    # Operands stay in the caller's dtype (full MXU rate for bf16), f32 accumulate.
    s = lax.dot_general(
        q_ref[0], k_ref[0],
        dimension_numbers=(((1,), (1,)), ((), ())),
        preferred_element_type=jnp.float32,
    )  # (tq, tkv) f32
    if masked:
        # Precomputed 0 / -1e30 bias row: one broadcast VPU add instead of
        # iota+compare+select every kv step.
        s = s + kbias_ref[...]

    m_prev = m_sc[...]
    m_new = jnp.maximum(m_prev, jnp.max(s, axis=-1, keepdims=True))
    alpha = jnp.exp(m_prev - m_new)
    p = jnp.exp(s - m_new)
    l_sc[...] = alpha * l_sc[...] + jnp.sum(p, axis=-1, keepdims=True)
    acc_sc[...] = alpha * acc_sc[...] + jnp.dot(
        p.astype(v_ref.dtype), v_ref[0], preferred_element_type=jnp.float32)
    m_sc[...] = m_new

    @pl.when(ki == pl.num_programs(2) - 1)
    def _finalize():
        inv_l = pl.reciprocal(l_sc[...], approx=False)  # once per q-tile: exact
        o_ref[0] = (acc_sc[...] * inv_l).astype(o_ref.dtype)


def my_attention(x, wq, wk, wv):
    """Single-head attention matching MyAttention.forward.

    x      : (B, S, d_model)
    wq, wk : (d_k, d_model)   -- PyTorch nn.Linear weight layout (out, in)
    wv     : (d_v, d_model)
    returns: (B, S, d_v)
    """
    B, S, d_model = x.shape
    d_k = wq.shape[0]
    d_v = wv.shape[0]
    dtype = x.dtype
    item = jnp.dtype(dtype).itemsize

    # Pad feature dims to 128 lanes and the sequence to the tile: every block is
    # (8,128)-aligned and all stores are lane-dense unmasked vst.
    dm_pad = _round_up(d_model, 128)
    dk_pad = _round_up(d_k, 128)
    dv_pad = _round_up(d_v, 128)
    tile = _choose_seq_tile(S)
    s_pad = _round_up(S, tile)
    tdm = _choose_red_tile(dm_pad)
    wtot = 2 * dk_pad + dv_pad

    scale = 1.0 / math.sqrt(d_k)

    x_p = x
    if (s_pad, dm_pad) != (S, d_model):
        x_p = jnp.pad(x, ((0, 0), (0, s_pad - S), (0, dm_pad - d_model)))

    def pad_wt(w, out_pad):
        # (out, in) -> (dm_pad, out_pad); zero padding -> padded rows/cols give 0.
        return jnp.pad(w.T, ((0, dm_pad - d_model), (0, out_pad - w.shape[0])))

    w_all = jnp.concatenate(
        [pad_wt(wq, dk_pad) * scale, pad_wt(wk, dk_pad), pad_wt(wv, dv_pad)],
        axis=1,
    ).astype(dtype)  # (dm_pad, 2*dk_pad + dv_pad)

    n_s = s_pad // tile
    n_dm = dm_pad // tdm

    # ---------------- Pass 1: fused Q/K/V projection (done exactly once) -------
    proj_vmem = (2 * (tile * tdm + tdm * wtot + tile * wtot) * item
                 + tile * wtot * 4)
    proj_cost = pl.CostEstimate(
        flops=int(2 * B * s_pad * dm_pad * wtot),
        transcendentals=0,
        bytes_accessed=int(item * (x_p.size + w_all.size + B * s_pad * wtot)),
    )
    q_p, k_p, v_p = pl.pallas_call(
        functools.partial(_qkv_proj_kernel, dk_pad=dk_pad),
        out_shape=(
            jax.ShapeDtypeStruct((B, s_pad, dk_pad), dtype),
            jax.ShapeDtypeStruct((B, s_pad, dk_pad), dtype),
            jax.ShapeDtypeStruct((B, s_pad, dv_pad), dtype),
        ),
        grid_spec=pltpu.PrefetchScalarGridSpec(
            num_scalar_prefetch=0,
            grid=(B, n_s, n_dm),
            in_specs=[
                pl.BlockSpec((1, tile, tdm), lambda b, si, di: (b, si, di)),
                pl.BlockSpec((tdm, wtot), lambda b, si, di: (di, 0)),
            ],
            out_specs=[
                pl.BlockSpec((1, tile, dk_pad), lambda b, si, di: (b, si, 0)),
                pl.BlockSpec((1, tile, dk_pad), lambda b, si, di: (b, si, 0)),
                pl.BlockSpec((1, tile, dv_pad), lambda b, si, di: (b, si, 0)),
            ],
            scratch_shapes=[pltpu.VMEM((tile, wtot), jnp.float32)],
        ),
        compiler_params=pltpu.CompilerParams(
            dimension_semantics=("parallel", "parallel", "arbitrary"),
            vmem_limit_bytes=int(min(64 << 20, max(2 * proj_vmem, 16 << 20))),
        ),
        cost_estimate=proj_cost,
    )(x_p, w_all)

    # ---------------- Pass 2: flash attention over projected tiles -------------
    masked = (s_pad != S)
    flash_inputs = [q_p, k_p, v_p]
    in_specs = [
        pl.BlockSpec((1, tile, dk_pad), lambda b, qi, ki: (b, qi, 0)),
        pl.BlockSpec((1, tile, dk_pad), lambda b, qi, ki: (b, ki, 0)),
        pl.BlockSpec((1, tile, dv_pad), lambda b, qi, ki: (b, ki, 0)),
    ]
    if masked:
        kbias = jnp.where(jnp.arange(s_pad) < S, 0.0, _NEG_INF)
        kbias = kbias.astype(jnp.float32).reshape(1, s_pad)
        flash_inputs.append(kbias)
        in_specs.append(pl.BlockSpec((1, tile), lambda b, qi, ki: (0, ki)))

    flash_vmem = (2 * (2 * tile * dk_pad + tile * dv_pad) * item   # q,k,v streams
                  + 2 * tile * dv_pad * item                        # output
                  + tile * (dv_pad + 2) * 4                         # scratch
                  + (2 * s_pad * 4 if masked else 0))               # bias row
    flash_cost = pl.CostEstimate(
        flops=int(2 * B * s_pad * s_pad * (dk_pad + dv_pad)),
        transcendentals=int(B * s_pad * s_pad),
        bytes_accessed=int(item * (B * s_pad * dk_pad
                                   + n_s * B * s_pad * (dk_pad + dv_pad)
                                   + B * s_pad * dv_pad)),
    )

    out_p = pl.pallas_call(
        functools.partial(_flash_attn_kernel, masked=masked),
        out_shape=jax.ShapeDtypeStruct((B, s_pad, dv_pad), dtype),
        grid_spec=pltpu.PrefetchScalarGridSpec(
            num_scalar_prefetch=0,
            grid=(B, n_s, n_s),
            in_specs=in_specs,
            out_specs=pl.BlockSpec((1, tile, dv_pad), lambda b, qi, ki: (b, qi, 0)),
            scratch_shapes=[
                pltpu.VMEM((tile, 1), jnp.float32),        # running max
                pltpu.VMEM((tile, 1), jnp.float32),        # running sum
                pltpu.VMEM((tile, dv_pad), jnp.float32),   # output accumulator
            ],
        ),
        compiler_params=pltpu.CompilerParams(
            dimension_semantics=("parallel", "parallel", "arbitrary"),
            vmem_limit_bytes=int(min(64 << 20, max(2 * flash_vmem, 16 << 20))),
        ),
        cost_estimate=flash_cost,
    )(*flash_inputs)

    return out_p[:, :S, :d_v]


def _reference(x, wq, wk, wv):
    q = x @ wq.T
    k = x @ wk.T
    v = x @ wv.T
    s = jax.nn.softmax(q @ jnp.swapaxes(k, -1, -2) / math.sqrt(k.shape[-1]), axis=-1)
    return s @ v


def _check(key, B, S, d_model, d_k, d_v):
    kx, kq, kk, kv = jax.random.split(key, 4)
    x = jax.random.normal(kx, (B, S, d_model), dtype=jnp.float32)
    # Deterministic "Linear" weights, PyTorch layout (out_features, in_features).
    wq = jax.random.normal(kq, (d_k, d_model), dtype=jnp.float32) / math.sqrt(d_model)
    wk = jax.random.normal(kk, (d_k, d_model), dtype=jnp.float32) / math.sqrt(d_model)
    wv = jax.random.normal(kv, (d_v, d_model), dtype=jnp.float32) / math.sqrt(d_model)

    out = jax.block_until_ready(my_attention(x, wq, wk, wv))
    ref = _reference(x, wq, wk, wv)

    assert out.shape == (B, S, d_v), out.shape
    err = float(jnp.max(jnp.abs(out - ref)))
    assert jnp.allclose(out, ref, atol=1e-4, rtol=1e-4), err


if __name__ == "__main__":
    key = jax.random.PRNGKey(0)
    k1, k2 = jax.random.split(key)
    # Primary shapes implied by the module: batch=2, seq=8, d_model=32, d_k=16, d_v=16.
    _check(k1, B=2, S=8, d_model=32, d_k=16, d_v=16)
    # Exercise the padded-sequence / masked-key path as well.
    _check(k2, B=1, S=12, d_model=48, d_k=24, d_v=40)
    print("KERNEL_OK")
</pallas_src>

<mosaic_0001>
module attributes {stable_mosaic.version = 11 : i64} {
  func.func @_qkv_proj_kernel(%arg0: i32, %arg1: i32, %arg2: i32, %arg3: memref<1x8x128xf32, #tpu.memory_space<vmem>>, %arg4: memref<128x384xf32, #tpu.memory_space<vmem>>, %arg5: memref<1x8x128xf32, #tpu.memory_space<vmem>>, %arg6: memref<1x8x128xf32, #tpu.memory_space<vmem>>, %arg7: memref<1x8x128xf32, #tpu.memory_space<vmem>>, %arg8: memref<8x384xf32, #tpu.memory_space<vmem>>) attributes {dimension_semantics = [#tpu.dimension_semantics<parallel>, #tpu.dimension_semantics<parallel>, #tpu.dimension_semantics<arbitrary>], iteration_bounds = array<i64: 2, 1, 1>, scalar_prefetch = 0 : i64, scratch_operands = 1 : i64, tpu.core_type = #tpu.core_type<tc>, window_params = [{transform_indices = @transform_0, window_bounds = array<i64: 1, 8, 128>}, {transform_indices = @transform_1, window_bounds = array<i64: 128, 384>}, {transform_indices = @transform_2, window_bounds = array<i64: 1, 8, 128>}, {transform_indices = @transform_3, window_bounds = array<i64: 1, 8, 128>}, {transform_indices = @transform_4, window_bounds = array<i64: 1, 8, 128>}]} {
    %c0_i32 = arith.constant 0 : i32
    %0 = arith.cmpi eq, %arg2, %c0_i32 : i32
    %1 = arith.extui %0 : i1 to i32
    %c0_i32_0 = arith.constant 0 : i32
    %2 = arith.cmpi ne, %1, %c0_i32_0 : i32
    scf.if %2 {
      %cst_11 = arith.constant 0.000000e+00 : f32
      %13 = vector.broadcast %cst_11 : f32 to vector<8x384xf32>
      %c0_12 = arith.constant 0 : index
      %c0_13 = arith.constant 0 : index
      %14 = vector.load %arg8[%c0_12, %c0_13] : memref<8x384xf32, #tpu.memory_space<vmem>>, vector<8x384xf32>
      tpu.vector_store %arg8[%c0_12, %c0_13], %13 {strides = array<i32>} : memref<8x384xf32, #tpu.memory_space<vmem>>, vector<8x384xf32>,
    } else {
    }
    %c0 = arith.constant 0 : index
    %c0_1 = arith.constant 0 : index
    %3 = vector.load %arg8[%c0, %c0_1] : memref<8x384xf32, #tpu.memory_space<vmem>>, vector<8x384xf32>
    %c0_2 = arith.constant 0 : index
    %c0_3 = arith.constant 0 : index
    %c0_4 = arith.constant 0 : index
    %4 = vector.load %arg3[%c0_2, %c0_3, %c0_4] : memref<1x8x128xf32, #tpu.memory_space<vmem>>, vector<1x8x128xf32>
    %5 = vector.shape_cast %4 : vector<1x8x128xf32> to vector<8x128xf32>
    %c0_5 = arith.constant 0 : index
    %c0_6 = arith.constant 0 : index
    %6 = vector.load %arg4[%c0_5, %c0_6] : memref<128x384xf32, #tpu.memory_space<vmem>>, vector<128x384xf32>
    %cst = arith.constant dense<0.000000e+00> : vector<8x384xf32>
    %7 = tpu.matmul %5, %6, %cst {dimension_numbers = #tpu.dot_dimension_numbers<[1], [0], [0], [1], [0, 0, 1, 1], [], []>} : vector<8x128xf32>, vector<128x384xf32>, vector<8x384xf32> -> vector<8x384xf32>
    %8 = arith.addf %3, %7 : vector<8x384xf32>
    %c0_7 = arith.constant 0 : index
    %c0_8 = arith.constant 0 : index
    %9 = vector.load %arg8[%c0_7, %c0_8] : memref<8x384xf32, #tpu.memory_space<vmem>>, vector<8x384xf32>
    tpu.vector_store %arg8[%c0_7, %c0_8], %8 {strides = array<i32>} : memref<8x384xf32, #tpu.memory_space<vmem>>, vector<8x384xf32>,
    %c0_i32_9 = arith.constant 0 : i32
    %10 = arith.cmpi eq, %arg2, %c0_i32_9 : i32
    %11 = arith.extui %10 : i1 to i32
    %c0_i32_10 = arith.constant 0 : i32
    %12 = arith.cmpi ne, %11, %c0_i32_10 : i32
    scf.if %12 {
      %c0_11 = arith.constant 0 : index
      %c0_12 = arith.constant 0 : index
      %13 = vector.load %arg8[%c0_11, %c0_12] : memref<8x384xf32, #tpu.memory_space<vmem>>, vector<8x384xf32>
      %14 = vector.extract_strided_slice %13 {offsets = [0, 0], sizes = [8, 128], strides = [1, 1]} : vector<8x384xf32> to vector<8x128xf32>
      %c0_13 = arith.constant 0 : index
      %c0_14 = arith.constant 0 : index
      %c0_15 = arith.constant 0 : index
      %15 = vector.load %arg5[%c0_13, %c0_14, %c0_15] : memref<1x8x128xf32, #tpu.memory_space<vmem>>, vector<1x8x128xf32>
      %16 = vector.shape_cast %15 : vector<1x8x128xf32> to vector<8x128xf32>
      %17 = vector.shape_cast %14 : vector<8x128xf32> to vector<1x8x128xf32>
      tpu.vector_store %arg5[%c0_13, %c0_14, %c0_15], %17 {strides = array<i32>} : memref<1x8x128xf32, #tpu.memory_space<vmem>>, vector<1x8x128xf32>,
      %18 = vector.extract_strided_slice %13 {offsets = [0, 128], sizes = [8, 128], strides = [1, 1]} : vector<8x384xf32> to vector<8x128xf32>
      %c0_16 = arith.constant 0 : index
      %c0_17 = arith.constant 0 : index
      %c0_18 = arith.constant 0 : index
      %19 = vector.load %arg6[%c0_16, %c0_17, %c0_18] : memref<1x8x128xf32, #tpu.memory_space<vmem>>, vector<1x8x128xf32>
      %20 = vector.shape_cast %19 : vector<1x8x128xf32> to vector<8x128xf32>
      %21 = vector.shape_cast %18 : vector<8x128xf32> to vector<1x8x128xf32>
      tpu.vector_store %arg6[%c0_16, %c0_17, %c0_18], %21 {strides = array<i32>} : memref<1x8x128xf32, #tpu.memory_space<vmem>>, vector<1x8x128xf32>,
      %22 = vector.extract_strided_slice %13 {offsets = [0, 256], sizes = [8, 128], strides = [1, 1]} : vector<8x384xf32> to vector<8x128xf32>
      %c0_19 = arith.constant 0 : index
      %c0_20 = arith.constant 0 : index
      %c0_21 = arith.constant 0 : index
      %23 = vector.load %arg7[%c0_19, %c0_20, %c0_21] : memref<1x8x128xf32, #tpu.memory_space<vmem>>, vector<1x8x128xf32>
      %24 = vector.shape_cast %23 : vector<1x8x128xf32> to vector<8x128xf32>
      %25 = vector.shape_cast %22 : vector<8x128xf32> to vector<1x8x128xf32>
      tpu.vector_store %arg7[%c0_19, %c0_20, %c0_21], %25 {strides = array<i32>} : memref<1x8x128xf32, #tpu.memory_space<vmem>>, vector<1x8x128xf32>,
    } else {
    }
    return
  }
  func.func @transform_0(%arg0: i32, %arg1: i32, %arg2: i32) -> (i32, i32, i32) {
    %c0_i32 = arith.constant 0 : i32
    return %arg0, %arg1, %arg2 : i32, i32, i32
  }
  func.func @transform_1(%arg0: i32, %arg1: i32, %arg2: i32) -> (i32, i32) {
    %c0_i32 = arith.constant 0 : i32
    %c0_i32_0 = arith.constant 0 : i32
    return %arg2, %c0_i32 : i32, i32
  }
  func.func @transform_2(%arg0: i32, %arg1: i32, %arg2: i32) -> (i32, i32, i32) {
    %c0_i32 = arith.constant 0 : i32
    %c0_i32_0 = arith.constant 0 : i32
    return %arg0, %arg1, %c0_i32 : i32, i32, i32
  }
  func.func @transform_3(%arg0: i32, %arg1: i32, %arg2: i32) -> (i32, i32, i32) {
    %c0_i32 = arith.constant 0 : i32
    %c0_i32_0 = arith.constant 0 : i32
    return %arg0, %arg1, %c0_i32 : i32, i32, i32
  }
  func.func @transform_4(%arg0: i32, %arg1: i32, %arg2: i32) -> (i32, i32, i32) {
    %c0_i32 = arith.constant 0 : i32
    %c0_i32_0 = arith.constant 0 : i32
    return %arg0, %arg1, %c0_i32 : i32, i32, i32
  }
}

</mosaic_0001>

<llo_original>
// kernel: tpu_custom_call.1
$region0: #{tpu_custom_call.1}
  #allocation0 [shape = 'u32[]', space=smem, size = 0x4, offset = 0x4, fixed_abs, tag = 'smem constant byte address 0x4 - core index']
  #allocation1 [shape = 'u32[72,128]{1,0:T(1,128)}', space=vmem, size = 0x9000, scoped, tag = 'internal scratch']
  #allocation2 [shape = 'f32[8,384]{1,0:T(8,128)}', space=vmem, size = 0x3000, scoped, tag = 'scratch operand']
  %s0 = inlined_call_operand.hbm [shape: f32[2,8,128], index: 0, kind: input, shape index: {}]
  %s1 = inlined_call_operand.hbm [shape: f32[128,384], index: 1, kind: input, shape index: {}]
  %s2 = inlined_call_operand.hbm [shape: f32[2,8,128], index: 2, kind: output, shape index: {0}]
  %s3 = inlined_call_operand.hbm [shape: f32[2,8,128], index: 3, kind: output, shape index: {1}]
  %s4 = inlined_call_operand.hbm [shape: f32[2,8,128], index: 4, kind: output, shape index: {2}]
  %5 = xla_tuple %s2, %s3, %s4
  %s6 = sld [smem:[#allocation0]]
  $region73: #{tpu_custom_call.1} parent=0
    _
  %s8 = ssub.s32 1, %s6
  %s9 = scalar_select 0, %s8, %s6
  $region1: #{tpu_custom_call.1} parent=0
    #allocation3 [shape = 'u8[8192]{0}', space=vmem, size = 0x2000, scoped, tag = 'input window, operand 0']
    #allocation4 [shape = 's32[2]{0}', space=sflag, size = 0x8, scoped, tag = 'scoped memory for tpu_custom_call.1']
    #allocation5 [shape = 's32[2]{0}', space=sflag, size = 0x8, scoped, tag = 'scoped memory for tpu_custom_call.1']
    #allocation6 [shape = 'u8[196608]{0}', space=vmem, size = 0x30000, scoped, tag = 'input window, operand 1, single buffered']
    #allocation7 [shape = 's32[1]{0}', space=sflag, size = 0x4, scoped, tag = 'scoped memory for tpu_custom_call.1']
    #allocation8 [shape = 'u8[8192]{0}', space=vmem, size = 0x2000, scoped, tag = 'output window, operand 0']
    #allocation9 [shape = 'u8[8192]{0}', space=vmem, size = 0x2000, scoped, tag = 'output window, operand 1']
    #allocation10 [shape = 's32[2]{0}', space=sflag, size = 0x8, scoped, tag = 'scoped memory for tpu_custom_call.1']
    #allocation11 [shape = 'u8[8192]{0}', space=vmem, size = 0x2000, scoped, tag = 'output window, operand 2']
    %10 = vsyncpa [#allocation4], 0
    %s11 = scalar_lea.sflag [#allocation4], 1
    %12 = vsyncpa %s11, 0
    %13 = vsyncpa [#allocation7], 0
    %14 = vsyncpa [#allocation5], 0
    %s15 = scalar_lea.sflag [#allocation5], 1
    %16 = vsyncpa %s15, 0
    %17 = vsyncpa [#allocation10], 0
    %s18 = scalar_lea.sflag [#allocation10], 1
    %19 = vsyncpa %s18, 0
    loop: start=0, step=1, limit=4
    $region2: #{tpu_custom_call.1} parent=1 // loop_pre_header
      _
    $region3: #{tpu_custom_call.1} parent=1 // loop_header
      %s21 = sphi 0, %s25
      %p22 = scmp.ge.s32.totalorder %s21, 4
      %s28 = sphi 0, %s47
      %s29 = sphi 0, %s43
      %s30 = sphi 0, %s39
      %s31 = sphi 0, %s28
      %s32 = sphi 0, %s29
      %s33 = sphi 0, %s30
      %s34 = sphi 0, %s31
      %s35 = sphi 0, %s32
      %s36 = sphi 0, %s33
      %s54 = sphi 0, %s56
      %s57 = sphi 0, %s54
      %s58 = sphi 0, %s57
      %s74 = sphi 0, %s58
      %s80 = sphi 0, %s82
      %s83 = sphi 0, %s80
      %s84 = sphi 0, %s83
      %s100 = sphi 0, %s84
      %s108 = sphi 0, %s110
      %s111 = sphi 0, %s108
      %s112 = sphi 0, %s111
      %s128 = sphi 0, %s112
      %s136 = sphi 0, %s138
      %s139 = sphi 0, %s136
      %s140 = sphi 0, %s139
      %s156 = sphi 0, %s140
      %s164 = sphi 0, %s166
      %s167 = sphi 0, %s164
      %s168 = sphi 0, %s167
      %s184 = sphi 0, %s168
    $region4: #{tpu_custom_call.1} parent=1 // loop_header_branch
      %24 = sbr.rel (%p22) target = $region8
    $region5: #{tpu_custom_call.1} parent=1 // loop_body
      %s26 = ssub.s32 %s21, 1
      %s27 = ssub.s32 %s21, 2
      %s37 = sadd.s32 1, %s30
      %p38 = scmp.ge.s32.totalorder %s37, 1
      %s39 = scalar_select %p38, 0, %s37
      %s40 = sadd.s32 1, %s29
      %s41 = scalar_select %p38, %s40, %s29
      %p42 = scmp.ge.s32.totalorder %s41, 1
      %s43 = scalar_select %p42, 0, %s41
      %s44 = sadd.s32 1, %s28
      %s45 = scalar_select %p42, %s44, %s28
      %p46 = scmp.ge.s32.totalorder %s45, 2
      %s47 = scalar_select %p46, 0, %s45
      %s48 = ssub.s32 %s28, %s47
      %s49 = ssub.s32 %s29, %s43
      %s50 = sor.u32 %s48, %s49
      %s51 = ssub.s32 %s30, %s39
      %s52 = sor.u32 %s50, %s51
      %p53 = scmp.eq.s32.totalorder %s52, 0
      %s55 = sadd.s32 %s54, 1
      %s56 = scalar_select %p53, %s54, %s55
      %p59 = pneg %p53
      %p60 = scmp.eq.s32.totalorder %s21, 1
      %p61 = por %p59, %p60
      %p62 = scmp.ne.s32.totalorder %s54, %s57
      %p63 = scmp.eq.s32.totalorder %s21, 0
      %p64 = por %p62, %p63
      %p65 = scmp.ne.s32.totalorder %s54, %s57
      %p66 = scmp.eq.s32.totalorder %s26, 1
      %p67 = por %p65, %p66
      %p68 = scmp.ne.s32.totalorder %s57, %s58
      %p69 = scmp.eq.s32.totalorder %s26, 0
      %p70 = por %p68, %p69
      %p71 = scmp.ne.s32.totalorder %s57, %s58
      %p72 = scmp.eq.s32.totalorder %s27, 1
      %p73 = por %p71, %p72
      %p75 = scmp.ne.s32.totalorder %s58, %s74
      %p76 = scmp.eq.s32.totalorder %s27, 0
      %p77 = por %p75, %p76
      %s78 = ssub.s32 %s30, %s39
      %p79 = scmp.eq.s32.totalorder %s78, 0
      %s81 = sadd.s32 %s80, 1
      %s82 = scalar_select %p79, %s80, %s81
      %p85 = pneg %p79
      %p86 = scmp.eq.s32.totalorder %s21, 1
      %p87 = por %p85, %p86
      %p88 = scmp.ne.s32.totalorder %s80, %s83
      %p89 = scmp.eq.s32.totalorder %s21, 0
      %p90 = por %p88, %p89
      %p91 = scmp.ne.s32.totalorder %s80, %s83
      %p92 = scmp.eq.s32.totalorder %s26, 1
      %p93 = por %p91, %p92
      %p94 = scmp.ne.s32.totalorder %s83, %s84
      %p95 = scmp.eq.s32.totalorder %s26, 0
      %p96 = por %p94, %p95
      %p97 = scmp.ne.s32.totalorder %s83, %s84
      %p98 = scmp.eq.s32.totalorder %s27, 1
      %p99 = por %p97, %p98
      %p101 = scmp.ne.s32.totalorder %s84, %s100
      %p102 = scmp.eq.s32.totalorder %s27, 0
      %p103 = por %p101, %p102
      %s104 = ssub.s32 %s28, %s47
      %s105 = ssub.s32 %s29, %s43
      %s106 = sor.u32 %s104, %s105
      %p107 = scmp.eq.s32.totalorder %s106, 0
      %s109 = sadd.s32 %s108, 1
      %s110 = scalar_select %p107, %s108, %s109
      %p113 = pneg %p107
      %p114 = scmp.eq.s32.totalorder %s21, 1
      %p115 = por %p113, %p114
      %p116 = scmp.ne.s32.totalorder %s108, %s111
      %p117 = scmp.eq.s32.totalorder %s21, 0
      %p118 = por %p116, %p117
      %p119 = scmp.ne.s32.totalorder %s108, %s111
      %p120 = scmp.eq.s32.totalorder %s26, 1
      %p121 = por %p119, %p120
      %p122 = scmp.ne.s32.totalorder %s111, %s112
      %p123 = scmp.eq.s32.totalorder %s26, 0
      %p124 = por %p122, %p123
      %p125 = scmp.ne.s32.totalorder %s111, %s112
      %p126 = scmp.eq.s32.totalorder %s27, 1
      %p127 = por %p125, %p126
      %p129 = scmp.ne.s32.totalorder %s112, %s128
      %p130 = scmp.eq.s32.totalorder %s27, 0
      %p131 = por %p129, %p130
      %s132 = ssub.s32 %s28, %s47
      %s133 = ssub.s32 %s29, %s43
      %s134 = sor.u32 %s132, %s133
      %p135 = scmp.eq.s32.totalorder %s134, 0
      %s137 = sadd.s32 %s136, 1
      %s138 = scalar_select %p135, %s136, %s137
      %p141 = pneg %p135
      %p142 = scmp.eq.s32.totalorder %s21, 1
      %p143 = por %p141, %p142
      %p144 = scmp.ne.s32.totalorder %s136, %s139
      %p145 = scmp.eq.s32.totalorder %s21, 0
      %p146 = por %p144, %p145
      %p147 = scmp.ne.s32.totalorder %s136, %s139
      %p148 = scmp.eq.s32.totalorder %s26, 1
      %p149 = por %p147, %p148
      %p150 = scmp.ne.s32.totalorder %s139, %s140
      %p151 = scmp.eq.s32.totalorder %s26, 0
      %p152 = por %p150, %p151
      %p153 = scmp.ne.s32.totalorder %s139, %s140
      %p154 = scmp.eq.s32.totalorder %s27, 1
      %p155 = por %p153, %p154
      %p157 = scmp.ne.s32.totalorder %s140, %s156
      %p158 = scmp.eq.s32.totalorder %s27, 0
      %p159 = por %p157, %p158
      %s160 = ssub.s32 %s28, %s47
      %s161 = ssub.s32 %s29, %s43
      %s162 = sor.u32 %s160, %s161
      %p163 = scmp.eq.s32.totalorder %s162, 0
      %s165 = sadd.s32 %s164, 1
      %s166 = scalar_select %p163, %s164, %s165
      %p169 = pneg %p163
      %p170 = scmp.eq.s32.totalorder %s21, 1
      %p171 = por %p169, %p170
      %p172 = scmp.ne.s32.totalorder %s164, %s167
      %p173 = scmp.eq.s32.totalorder %s21, 0
      %p174 = por %p172, %p173
      %p175 = scmp.ne.s32.totalorder %s164, %s167
      %p176 = scmp.eq.s32.totalorder %s26, 1
      %p177 = por %p175, %p176
      %p178 = scmp.ne.s32.totalorder %s167, %s168
      %p179 = scmp.eq.s32.totalorder %s26, 0
      %p180 = por %p178, %p179
      %p181 = scmp.ne.s32.totalorder %s167, %s168
      %p182 = scmp.eq.s32.totalorder %s27, 1
      %p183 = por %p181, %p182
      %p185 = scmp.ne.s32.totalorder %s168, %s184
      %p186 = scmp.eq.s32.totalorder %s27, 0
      %p187 = por %p185, %p186
      %p188 = scmp.le.s32.totalorder 1, %s21
      %p189 = scmp.lt.s32.totalorder %s21, 3
      %p190 = pnand %p188, %p189
      %p191 = pneg %p190
      // Predicated region
      $region9: #{tpu_custom_call.1} parent=5 // pred_check
        _
      $region10: #{tpu_custom_call.1} parent=5 // pred_check_branch
        %193 = sbr.rel (%p190) target = $region12
      $region11: #{tpu_custom_call.1} parent=5 // pred_region
        %s194 = ssub.s32 %s21, 1
        // Predicated region
        $region13: #{tpu_custom_call.1} parent=11 // pred_check
          %p195 = pneg %p96
        $region14: #{tpu_custom_call.1} parent=11 // pred_check_branch
          %197 = sbr.rel (%p195) target = $region16
        $region15: #{tpu_custom_call.1} parent=11 // pred_region
          %s198 = smul.u32 16, %s33
          %200 = vsyncadd [#allocation7], 0
          %s201 = smul.addr %s198, 3
          %s202 = smul.addr %s201, 8
          %s203 = scalar_lea.hbm %s1, %s202
          %s204 = sshll.u32 %s203, 4
          %s205 = int_to_ptr.hbm [resolvable:$true] %s204
          %s206 = sshll.u32 [#allocation6], 4
          %s207 = int_to_ptr.vmem [resolvable:$true] %s206
          %212 = dma.hbm_to_vmem [thread:$0]  %s205, 6144, %s207, [#allocation7], 384, 384, 24
        $region16: #{tpu_custom_call.1} parent=11 // pred_fallthru
          _
      $region12: #{tpu_custom_call.1} parent=5 // pred_fallthru
        _
      %p213 = scmp.lt.s32.totalorder %s21, 2
      // Predicated region
      $region17: #{tpu_custom_call.1} parent=5 // pred_check
        %p214 = pneg %p213
      $region18: #{tpu_custom_call.1} parent=5 // pred_check_branch
        %216 = sbr.rel (%p214) target = $region20
      $region19: #{tpu_custom_call.1} parent=5 // pred_region
        // Predicated region
        $region21: #{tpu_custom_call.1} parent=19 // pred_check
          %p217 = pneg %p64
        $region22: #{tpu_custom_call.1} parent=19 // pred_check_branch
          %219 = sbr.rel (%p217) target = $region24
        $region23: #{tpu_custom_call.1} parent=19 // pred_region
          %s220 = sand.u32 %s54, 1
          %s221 = scalar_lea.sflag [#allocation4], %s220
          %s222 = sand.u32 %s54, 1
          %s223 = smul.addr %s222, 8
          %s224 = scalar_lea.vmem [#allocation3], %s223
          %226 = vsyncadd %s221, 0
          %s227 = sadd.s32 %s30, %s29
          %s228 = sadd.s32 %s227, %s28
          %s229 = smul.addr %s228, 8
          %s230 = scalar_lea.hbm %s0, %s229
          %s232 = sshll.u32 %s230, 4
          %s233 = int_to_ptr.hbm [resolvable:$true] %s232
          %s234 = sshll.u32 %s224, 4
          %s235 = int_to_ptr.vmem [resolvable:$true] %s234
          %237 = dma.hbm_to_vmem [thread:$0]  %s233, 128, %s235, %s221
        $region24: #{tpu_custom_call.1} parent=19 // pred_fallthru
          _
      $region20: #{tpu_custom_call.1} parent=5 // pred_fallthru
        _
      %p238 = scmp.le.s32.totalorder 1, %s21
      %p239 = scmp.lt.s32.totalorder %s21, 3
      %p240 = pnand %p238, %p239
      %p241 = pneg %p240
      // Predicated region
      $region25: #{tpu_custom_call.1} parent=5 // pred_check
        _
      $region26: #{tpu_custom_call.1} parent=5 // pred_check_branch
        %243 = sbr.rel (%p240) target = $region28
      $region27: #{tpu_custom_call.1} parent=5 // pred_region
        %s244 = ssub.s32 %s21, 1
        %s245 = sand.u32 %s57, 1
        %s246 = scalar_lea.sflag [#allocation4], %s245
        %s247 = sand.u32 %s57, 1
        %s248 = smul.addr %s247, 8
        %s249 = scalar_lea.vmem [#allocation3], %s248
        // Predicated region
        $region29: #{tpu_custom_call.1} parent=27 // pred_check
          %p250 = pneg %p70
        $region30: #{tpu_custom_call.1} parent=27 // pred_check_branch
          %252 = sbr.rel (%p250) target = $region32
        $region31: #{tpu_custom_call.1} parent=27 // pred_region
          %254 = dma.done %s246, 128
        $region32: #{tpu_custom_call.1} parent=27 // pred_fallthru
          _
        // Predicated region
        $region33: #{tpu_custom_call.1} parent=27 // pred_check
          %p255 = pneg %p96
        $region34: #{tpu_custom_call.1} parent=27 // pred_check_branch
          %257 = sbr.rel (%p255) target = $region36
        $region35: #{tpu_custom_call.1} parent=27 // pred_region
          %259 = dma.done [#allocation7], 6144
        $region36: #{tpu_custom_call.1} parent=27 // pred_fallthru
          _
        %s260 = sand.u32 %s57, 1
        %s261 = scalar_lea.sflag [#allocation4], %s260
        %s262 = sand.u32 %s57, 1
        %s263 = smul.addr %s262, 8
        %s264 = scalar_lea.vmem [#allocation3], %s263
        %p265 = pneg %p70
        %p266 = pneg %p67
        %p267 = pneg %p96
        %p268 = pneg %p93
        %p269 = pneg %p124
        %p270 = pneg %p121
        %s271 = sand.u32 %s111, 1
        %s272 = scalar_lea.sflag [#allocation5], %s271
        %s273 = sand.u32 %s111, 1
        %s274 = smul.addr %s273, 8
        %s275 = scalar_lea.vmem [#allocation8], %s274
        %p276 = pneg %p152
        %p277 = pneg %p149
        %s278 = sand.u32 %s26, 1
        %s279 = scalar_lea.sflag [#allocation10], %s278
        %s280 = sand.u32 %s139, 1
        %s281 = smul.addr %s280, 8
        %s282 = scalar_lea.vmem [#allocation9], %s281
        %p283 = pneg %p180
        %p284 = pneg %p177
        %s285 = sand.u32 %s26, 1
        %s286 = scalar_lea.sflag [#allocation10], %s285
        %s287 = sand.u32 %s167, 1
        %s288 = smul.addr %s287, 8
        %s289 = scalar_lea.vmem [#allocation11], %s288
        %s290 = smul.u32 16, %s33
        %p291 = scmp.eq.s32.totalorder %s33, 0
        // Predicated region
        $region37: #{tpu_custom_call.1} parent=27 // pred_check
          %p292 = pneg %p291
        $region38: #{tpu_custom_call.1} parent=27 // pred_check_branch
          %294 = sbr.rel (%p292) target = $region40
        $region39: #{tpu_custom_call.1} parent=27 // pred_region
          %295 = vst [vmem:[#allocation2] sm:$0xff] 0.0
          %296 = vst [vmem:[#allocation2 + $0x8] sm:$0xff] 0.0
          %297 = vst [vmem:[#allocation2 + $0x10] sm:$0xff] 0.0
        $region40: #{tpu_custom_call.1} parent=27 // pred_fallthru
          _
        %v298 = vld [vmem:[#allocation2] sm:$0xff]
        %v299 = vld [vmem:[#allocation2 + $0x8] sm:$0xff]
        %v300 = vld [vmem:[#allocation2 + $0x10] sm:$0xff]
        %v301 = vld [vmem:[%s249] sm:$0xff]
        %v302 = vld [vmem:[#allocation6] sm:$0xff]
        %v303 = vld [vmem:[#allocation6 + $0x8] sm:$0xff]
        %v304 = vld [vmem:[#allocation6 + $0x10] sm:$0xff]
        %v305 = vld [vmem:[#allocation6 + $0x18] sm:$0xff]
        %v306 = vld [vmem:[#allocation6 + $0x20] sm:$0xff]
        %v307 = vld [vmem:[#allocation6 + $0x28] sm:$0xff]
        %v308 = vld [vmem:[#allocation6 + $0x30] sm:$0xff]
        %v309 = vld [vmem:[#allocation6 + $0x38] sm:$0xff]
        %v310 = vld [vmem:[#allocation6 + $0x40] sm:$0xff]
        %v311 = vld [vmem:[#allocation6 + $0x48] sm:$0xff]
        %v312 = vld [vmem:[#allocation6 + $0x50] sm:$0xff]
        %v313 = vld [vmem:[#allocation6 + $0x58] sm:$0xff]
        %v314 = vld [vmem:[#allocation6 + $0x60] sm:$0xff]
        %v315 = vld [vmem:[#allocation6 + $0x68] sm:$0xff]
        %v316 = vld [vmem:[#allocation6 + $0x70] sm:$0xff]
        %v317 = vld [vmem:[#allocation6 + $0x78] sm:$0xff]
        %v318 = vld [vmem:[#allocation6 + $0x80] sm:$0xff]
        %v319 = vld [vmem:[#allocation6 + $0x88] sm:$0xff]
        %v320 = vld [vmem:[#allocation6 + $0x90] sm:$0xff]
        %v321 = vld [vmem:[#allocation6 + $0x98] sm:$0xff]
        %v322 = vld [vmem:[#allocation6 + $0xa0] sm:$0xff]
        %v323 = vld [vmem:[#allocation6 + $0xa8] sm:$0xff]
        %v324 = vld [vmem:[#allocation6 + $0xb0] sm:$0xff]
        %v325 = vld [vmem:[#allocation6 + $0xb8] sm:$0xff]
        %v326 = vld [vmem:[#allocation6 + $0xc0] sm:$0xff]
        %v327 = vld [vmem:[#allocation6 + $0xc8] sm:$0xff]
        %v328 = vld [vmem:[#allocation6 + $0xd0] sm:$0xff]
        %v329 = vld [vmem:[#allocation6 + $0xd8] sm:$0xff]
        %v330 = vld [vmem:[#allocation6 + $0xe0] sm:$0xff]
        %v331 = vld [vmem:[#allocation6 + $0xe8] sm:$0xff]
        %v332 = vld [vmem:[#allocation6 + $0xf0] sm:$0xff]
        %v333 = vld [vmem:[#allocation6 + $0xf8] sm:$0xff]
        %v334 = vld [vmem:[#allocation6 + $0x100] sm:$0xff]
        %v335 = vld [vmem:[#allocation6 + $0x108] sm:$0xff]
        %v336 = vld [vmem:[#allocation6 + $0x110] sm:$0xff]
        %v337 = vld [vmem:[#allocation6 + $0x118] sm:$0xff]
        %v338 = vld [vmem:[#allocation6 + $0x120] sm:$0xff]
        %v339 = vld [vmem:[#allocation6 + $0x128] sm:$0xff]
        %v340 = vld [vmem:[#allocation6 + $0x130] sm:$0xff]
        %v341 = vld [vmem:[#allocation6 + $0x138] sm:$0xff]
        %v342 = vld [vmem:[#allocation6 + $0x140] sm:$0xff]
        %v343 = vld [vmem:[#allocation6 + $0x148] sm:$0xff]
        %v344 = vld [vmem:[#allocation6 + $0x150] sm:$0xff]
        %v345 = vld [vmem:[#allocation6 + $0x158] sm:$0xff]
        %v346 = vld [vmem:[#allocation6 + $0x160] sm:$0xff]
        %v347 = vld [vmem:[#allocation6 + $0x168] sm:$0xff]
        %v348 = vld [vmem:[#allocation6 + $0x170] sm:$0xff]
        %v349 = vld [vmem:[#allocation6 + $0x178] sm:$0xff]
        %350 = vmatpush.msra.mxu0 %v347
        %351 = vmatpush.msra.mxu0 %v344
        %352 = vmatpush.msra.mxu0 %v341
        %353 = vmatpush.msra.mxu0 %v338
        %354 = vmatpush.msra.mxu0 %v335
        %355 = vmatpush.msra.mxu0 %v332
        %356 = vmatpush.msra.mxu0 %v329
        %357 = vmatpush.msra.mxu0 %v326
        %358 = vmatpush.msra.mxu0 %v323
        %359 = vmatpush.msra.mxu0 %v320
        %360 = vmatpush.msra.mxu0 %v317
        %361 = vmatpush.msra.mxu0 %v314
        %362 = vmatpush.msra.mxu0 %v311
        %363 = vmatpush.msra.mxu0 %v308
        %364 = vmatpush.msra.mxu0 %v305
        %365 = vmatpush.msra.mxu0 %v302
        %366 = vmatmul.f32.gmra.mxu0 %v301
        %v367 = vpop.f32.mrf.mxu0
        %v368 = vadd.f32 0.0, %v367
        %369 = vdwg.mxu0
        %370 = vmatpush.msra.mxu0 %v348
        %371 = vmatpush.msra.mxu0 %v345
        %372 = vmatpush.msra.mxu0 %v342
        %373 = vmatpush.msra.mxu0 %v339
        %374 = vmatpush.msra.mxu0 %v336
        %375 = vmatpush.msra.mxu0 %v333
        %376 = vmatpush.msra.mxu0 %v330
        %377 = vmatpush.msra.mxu0 %v327
        %378 = vmatpush.msra.mxu0 %v324
        %379 = vmatpush.msra.mxu0 %v321
        %380 = vmatpush.msra.mxu0 %v318
        %381 = vmatpush.msra.mxu0 %v315
        %382 = vmatpush.msra.mxu0 %v312
        %383 = vmatpush.msra.mxu0 %v309
        %384 = vmatpush.msra.mxu0 %v306
        %385 = vmatpush.msra.mxu0 %v303
        %386 = vmatmul.f32.gmra.mxu0 %v301
        %v387 = vpop.f32.mrf.mxu0
        %v388 = vadd.f32 0.0, %v387
        %389 = vdwg.mxu0
        %390 = vmatpush.msra.mxu0 %v349
        %391 = vmatpush.msra.mxu0 %v346
        %392 = vmatpush.msra.mxu0 %v343
        %393 = vmatpush.msra.mxu0 %v340
        %394 = vmatpush.msra.mxu0 %v337
        %395 = vmatpush.msra.mxu0 %v334
        %396 = vmatpush.msra.mxu0 %v331
        %397 = vmatpush.msra.mxu0 %v328
        %398 = vmatpush.msra.mxu0 %v325
        %399 = vmatpush.msra.mxu0 %v322
        %400 = vmatpush.msra.mxu0 %v319
        %401 = vmatpush.msra.mxu0 %v316
        %402 = vmatpush.msra.mxu0 %v313
        %403 = vmatpush.msra.mxu0 %v310
        %404 = vmatpush.msra.mxu0 %v307
        %405 = vmatpush.msra.mxu0 %v304
        %406 = vmatmul.f32.gmra.mxu0 %v301
        %v407 = vpop.f32.mrf.mxu0
        %v408 = vadd.f32 0.0, %v407
        %409 = vdwg.mxu0
        %v410 = vadd.f32 %v298, %v368
        %v411 = vadd.f32 %v299, %v388
        %v412 = vadd.f32 %v300, %v408
        %413 = vst [vmem:[#allocation2] sm:$0xff] %v410
        %414 = vst [vmem:[#allocation2 + $0x8] sm:$0xff] %v411
        %415 = vst [vmem:[#allocation2 + $0x10] sm:$0xff] %v412
        // Predicated region
        $region41: #{tpu_custom_call.1} parent=27 // pred_check
          %p416 = pneg %p291
        $region42: #{tpu_custom_call.1} parent=27 // pred_check_branch
          %418 = sbr.rel (%p416) target = $region44
        $region43: #{tpu_custom_call.1} parent=27 // pred_region
          %v419 = vld [vmem:[#allocation2] sm:$0xff]
          %v420 = vld [vmem:[#allocation2 + $0x8] sm:$0xff]
          %v421 = vld [vmem:[#allocation2 + $0x10] sm:$0xff]
          %422 = vst [vmem:[%s275] sm:$0xff] %v419
          %423 = vst [vmem:[%s282] sm:$0xff] %v420
          %424 = vst [vmem:[%s289] sm:$0xff] %v421
        $region44: #{tpu_custom_call.1} parent=27 // pred_fallthru
          _
        %s425 = sand.u32 %s111, 1
        %s426 = scalar_lea.sflag [#allocation5], %s425
        %s427 = sand.u32 %s111, 1
        %s428 = smul.addr %s427, 8
        %s429 = scalar_lea.vmem [#allocation8], %s428
        %s430 = sand.u32 %s26, 1
        %s431 = scalar_lea.sflag [#allocation10], %s430
        %s432 = sand.u32 %s139, 1
        %s433 = smul.addr %s432, 8
        %s434 = scalar_lea.vmem [#allocation9], %s433
        %s435 = sand.u32 %s26, 1
        %s436 = scalar_lea.sflag [#allocation10], %s435
        %s437 = sand.u32 %s167, 1
        %s438 = smul.addr %s437, 8
        %s439 = scalar_lea.vmem [#allocation11], %s438
        // Predicated region
        $region45: #{tpu_custom_call.1} parent=27 // pred_check
          %p440 = pneg %p121
        $region46: #{tpu_custom_call.1} parent=27 // pred_check_branch
          %442 = sbr.rel (%p440) target = $region48
        $region47: #{tpu_custom_call.1} parent=27 // pred_region
          %444 = vsyncadd %s426, 0
          %s445 = sadd.s32 %s32, %s31
          %s446 = smul.addr %s445, 8
          %s447 = scalar_lea.hbm %s2, %s446
          %s449 = sshll.u32 %s429, 4
          %s450 = int_to_ptr.vmem [resolvable:$true] %s449
          %s451 = sshll.u32 %s447, 4
          %s452 = int_to_ptr.hbm [resolvable:$true] %s451
          %454 = dma.vmem_to_hbm [thread:$0]  %s450, 128, %s452, %s426
        $region48: #{tpu_custom_call.1} parent=27 // pred_fallthru
          _
        // Predicated region
        $region49: #{tpu_custom_call.1} parent=27 // pred_check
          %p455 = pneg %p149
        $region50: #{tpu_custom_call.1} parent=27 // pred_check_branch
          %457 = sbr.rel (%p455) target = $region52
        $region51: #{tpu_custom_call.1} parent=27 // pred_region
          %459 = vsyncadd %s431, 0
          %s460 = sadd.s32 %s32, %s31
          %s461 = smul.addr %s460, 8
          %s462 = scalar_lea.hbm %s3, %s461
          %s464 = sshll.u32 %s434, 4
          %s465 = int_to_ptr.vmem [resolvable:$true] %s464
          %s466 = sshll.u32 %s462, 4
          %s467 = int_to_ptr.hbm [resolvable:$true] %s466
          %469 = dma.vmem_to_hbm [thread:$0]  %s465, 128, %s467, %s431
        $region52: #{tpu_custom_call.1} parent=27 // pred_fallthru
          _
        // Predicated region
        $region53: #{tpu_custom_call.1} parent=27 // pred_check
          %p470 = pneg %p177
        $region54: #{tpu_custom_call.1} parent=27 // pred_check_branch
          %472 = sbr.rel (%p470) target = $region56
        $region55: #{tpu_custom_call.1} parent=27 // pred_region
          %474 = vsyncadd %s436, 0
          %s475 = sadd.s32 %s32, %s31
          %s476 = smul.addr %s475, 8
          %s477 = scalar_lea.hbm %s4, %s476
          %s479 = sshll.u32 %s439, 4
          %s480 = int_to_ptr.vmem [resolvable:$true] %s479
          %s481 = sshll.u32 %s477, 4
          %s482 = int_to_ptr.hbm [resolvable:$true] %s481
          %484 = dma.vmem_to_hbm [thread:$0]  %s480, 128, %s482, %s436
        $region56: #{tpu_custom_call.1} parent=27 // pred_fallthru
          _
      $region28: #{tpu_custom_call.1} parent=5 // pred_fallthru
        _
      %p485 = scmp.le.s32.totalorder 2, %s21
      // Predicated region
      $region57: #{tpu_custom_call.1} parent=5 // pred_check
        %p486 = pneg %p485
      $region58: #{tpu_custom_call.1} parent=5 // pred_check_branch
        %488 = sbr.rel (%p486) target = $region60
      $region59: #{tpu_custom_call.1} parent=5 // pred_region
        %s489 = ssub.s32 %s21, 2
        // Predicated region
        $region61: #{tpu_custom_call.1} parent=59 // pred_check
          %p490 = pneg %p127
        $region62: #{tpu_custom_call.1} parent=59 // pred_check_branch
          %492 = sbr.rel (%p490) target = $region64
        $region63: #{tpu_custom_call.1} parent=59 // pred_region
          %s493 = sand.u32 %s112, 1
          %s494 = scalar_lea.sflag [#allocation5], %s493
          %s495 = sand.u32 %s112, 1
          %s496 = smul.addr %s495, 8
          %s497 = scalar_lea.vmem [#allocation8], %s496
          %499 = dma.done %s494, 128
        $region64: #{tpu_custom_call.1} parent=59 // pred_fallthru
          _
        // Predicated region
        $region65: #{tpu_custom_call.1} parent=59 // pred_check
          %p500 = pneg %p155
        $region66: #{tpu_custom_call.1} parent=59 // pred_check_branch
          %502 = sbr.rel (%p500) target = $region68
        $region67: #{tpu_custom_call.1} parent=59 // pred_region
          %s503 = sand.u32 %s27, 1
          %s504 = scalar_lea.sflag [#allocation10], %s503
          %s505 = sand.u32 %s140, 1
          %s506 = smul.addr %s505, 8
          %s507 = scalar_lea.vmem [#allocation9], %s506
          %509 = dma.done %s504, 128
        $region68: #{tpu_custom_call.1} parent=59 // pred_fallthru
          _
        // Predicated region
        $region69: #{tpu_custom_call.1} parent=59 // pred_check
          %p510 = pneg %p183
        $region70: #{tpu_custom_call.1} parent=59 // pred_check_branch
          %512 = sbr.rel (%p510) target = $region72
        $region71: #{tpu_custom_call.1} parent=59 // pred_region
          %s513 = sand.u32 %s27, 1
          %s514 = scalar_lea.sflag [#allocation10], %s513
          %s515 = sand.u32 %s168, 1
          %s516 = smul.addr %s515, 8
          %s517 = scalar_lea.vmem [#allocation11], %s516
          %519 = dma.done %s514, 128
        $region72: #{tpu_custom_call.1} parent=59 // pred_fallthru
          _
      $region60: #{tpu_custom_call.1} parent=5 // pred_fallthru
        _
    $region6: #{tpu_custom_call.1} parent=1 // loop_footer
      %s25 = sadd.s32 1, %s21
    $region7: #{tpu_custom_call.1} parent=1 // loop_footer_branch
      %20 = sbr.rel target = $region3
    $region8: #{tpu_custom_call.1} parent=1 // loop_exit
      _
    %520 = vsyncpa [#allocation4], 1
    %s521 = scalar_lea.sflag [#allocation4], 1
    %522 = vsyncpa %s521, 1
    %523 = vsyncpa [#allocation7], 1
    %524 = vsyncpa [#allocation5], 1
    %s525 = scalar_lea.sflag [#allocation5], 1
    %526 = vsyncpa %s525, 1
    %527 = vsyncpa [#allocation10], 1
    %s528 = scalar_lea.sflag [#allocation10], 1
    %529 = vsyncpa %s528, 1

</llo_original>
